<compile_context>
chip_gen: v6e
topology: v6e:2x2x1
jax: 0.10.0
libtpu: 0.0.40
codegen_flags: <defaults>
</compile_context>

<pallas_src>
import functools
import math

import jax
import jax.numpy as jnp
from jax.experimental import pallas as pl
from jax.experimental.pallas import tpu as pltpu


# -------------------------- Bce default configuration -----------------------
FOCAL_ALPHA = 0.5
FOCAL_GAMMA = 1.0
SOFT_CLAMP_VALUE = 5.0
BACKGROUND_CLAMP = -15.0

LANEW = 512            # lane-dense width (multiple of 128)
MAX_BLOCK_R = 512      # rows per grid step (512*512*4 B = 1 MiB per buffer;
                       # 2x(3 in + 1 out) = 8 MiB pipeline, fits every gen)
ROW_ALIGN = 16         # sublane alignment valid for 16-bit and 32-bit dtypes
APPROX_RECIP = True    # EUP approximate reciprocal instead of a VPU divide


# ------------------------------- Pallas kernel ------------------------------
def _bce_kernel(x_ref, t_ref, logs2_ref, l_ref):
    # Upcast in-kernel: inputs may stay bf16/f32 in HBM (bandwidth win),
    # arithmetic is always f32.
    x = x_ref[...].astype(jnp.float32)
    t = t_ref[...].astype(jnp.float32)
    logs2_raw = logs2_ref[...].astype(jnp.float32)

    pos = t > 0.0          # foreground
    valid = t >= 0.0       # stand-in for PyTorch boolean-mask compaction
    t_sign = jnp.where(pos, 1.0, -1.0)

    # Shared exponential for sigmoid + softplus:
    #   e = exp(-z);  p_bar = 1/(1+exp(z)) = e/(1+e);  1 - p_bar = 1/(1+e);
    #   softplus(-z) = log1p(e).  Clamp z to avoid exp overflow.
    z = t_sign * x
    e = jnp.exp(-jnp.maximum(z, -80.0))
    inv = pl.reciprocal(1.0 + e, approx=APPROX_RECIP)   # EUP slot, not VPU divide
    p_bar = e * inv
    neg_ln_p = jnp.log1p(e)

    focal = FOCAL_ALPHA if FOCAL_ALPHA else 1.0
    if FOCAL_GAMMA == 1.0:
        focal = focal * (p_bar + inv * neg_ln_p)         # inv == 1 - p_bar
    elif FOCAL_GAMMA > 0.0:
        focal = focal * (p_bar ** FOCAL_GAMMA
                         + FOCAL_GAMMA * p_bar ** (FOCAL_GAMMA - 1.0) * inv * neg_ln_p)
    # gamma == 0.0 -> focal stays at the alpha scalar

    # target = x + t_sign * p_bar * focal  =>  |x - target| = p_bar * focal >= 0
    adiff = p_bar * focal
    l = jnp.where(adiff < 1.0, 0.5 * adiff * adiff, adiff - 0.5)  # smooth_l1, beta=1

    # background clamp, folded together with the invalid (t < 0) zeroing
    zero_mask = jnp.logical_not(valid)
    if BACKGROUND_CLAMP:
        zero_mask = zero_mask | ((x < BACKGROUND_CLAMP) & jnp.logical_not(pos))
    l = jnp.where(zero_mask, 0.0, l)

    # SoftClamp(5.0): l > 5  ->  5 + log(1 - 5 + l)
    if SOFT_CLAMP_VALUE:
        l = jnp.where(l > SOFT_CLAMP_VALUE,
                      SOFT_CLAMP_VALUE + jnp.log(l - (SOFT_CLAMP_VALUE - 1.0)),
                      l)

    # foreground uncertainty term
    x_logs2 = 3.0 * jnp.tanh(logs2_raw * (1.0 / 3.0))
    l_fg = 0.5 * l * jnp.exp(-x_logs2) + 0.5 * x_logs2
    l = jnp.where(pos, l_fg, l)

    l_ref[...] = l.astype(l_ref.dtype)
    # TODO(synk): self.weights (None by default) would multiply l here.


# --------------------------------- wrapper ----------------------------------
@functools.partial(jax.jit, static_argnames=("xi", "ti"))
def _bce_forward_impl(x_all, t_all, *, xi, ti):
    x = x_all[..., xi[0]]       # (B, A, C, D) selected-channel logits
    t = t_all[..., ti[0]]       # (B, A, C, D) targets
    logs2 = x_all[..., 0]       # (B, A, C, D) log-sigma^2 plane

    spatial_shape = x.shape
    n = math.prod(spatial_shape)

    # lane-dense padded layout: (r_pad, LANEW), r_pad a multiple of block_r
    r = pl.cdiv(n, LANEW)
    block_r = min(MAX_BLOCK_R, pl.cdiv(r, ROW_ALIGN) * ROW_ALIGN)
    r_pad = pl.cdiv(r, block_r) * block_r
    n_pad = r_pad * LANEW

    def prep(a, fill):
        flat = a.reshape(-1)
        flat = jnp.pad(flat, (0, n_pad - n), constant_values=fill)
        return flat.reshape(r_pad, LANEW)

    x2 = prep(x, 0.0)
    t2 = prep(t, -1.0)      # sentinel: padding is masked out (t < 0)
    g2 = prep(logs2, 0.0)

    spec = pl.BlockSpec((block_r, LANEW), lambda i: (i, 0))

    # 2x double-buffering of (3 inputs + 1 output) blocks, plus headroom;
    # clipped to 32 MiB so it is valid on v5e/v6e/v7x alike.
    block_bytes = block_r * LANEW * 4
    vmem_limit = min(32 * 1024 * 1024,
                     max(16 * 1024 * 1024, 2 * 4 * block_bytes + (2 << 20)))

    out = pl.pallas_call(
        _bce_kernel,
        out_shape=jax.ShapeDtypeStruct((r_pad, LANEW), x.dtype),
        grid_spec=pltpu.PrefetchScalarGridSpec(
            num_scalar_prefetch=0,
            grid=(r_pad // block_r,),
            in_specs=[spec, spec, spec],
            out_specs=spec,
        ),
        compiler_params=pltpu.CompilerParams(
            dimension_semantics=("parallel",),
            vmem_limit_bytes=vmem_limit),
    )(x2, t2, g2)

    return out.reshape(-1)[:n].reshape(spatial_shape + (1,))


def bce_forward(x_all, t_all, *, xi, ti):
    """Dense-masked Bce forward.

    x_all, t_all : (B, A, C, D, E) float arrays
    xi, ti       : length-1 channel index lists (as in the PyTorch module)
    returns      : (B, A, C, D, 1) per-element loss, 0 where t < 0.
    """
    assert len(xi) == 1 and len(ti) == 1, "logs2 indexing requires len(xi)==len(ti)==1"
    return _bce_forward_impl(x_all, t_all, xi=tuple(xi), ti=tuple(ti))


# ------------------------------ JAX reference -------------------------------
def _reference_dense(x_all, t_all, xi, ti):
    x = x_all[..., xi[0]].astype(jnp.float32)
    t = t_all[..., ti[0]].astype(jnp.float32)
    logs2 = x_all[..., 0].astype(jnp.float32)

    valid = t >= 0.0
    t_sign = jnp.where(t > 0.0, 1.0, -1.0)
    z = t_sign * x
    p_bar = 1.0 / (1.0 + jnp.exp(z))
    p = 1.0 - p_bar
    neg_ln_p = jax.nn.softplus(-z)
    focal = FOCAL_ALPHA * (p_bar + p * neg_ln_p)           # gamma == 1.0
    target = x + t_sign * p_bar * focal
    diff = x - target
    adiff = jnp.abs(diff)
    l = jnp.where(adiff < 1.0, 0.5 * diff * diff, adiff - 0.5)
    l = jnp.where((x < BACKGROUND_CLAMP) & (t_sign == -1.0), 0.0, l)
    l = jnp.where(l > SOFT_CLAMP_VALUE,
                  SOFT_CLAMP_VALUE + jnp.log(l - (SOFT_CLAMP_VALUE - 1.0)), l)
    x_logs2 = 3.0 * jnp.tanh(logs2 / 3.0)
    l = jnp.where(t > 0.0, 0.5 * l * jnp.exp(-x_logs2) + 0.5 * x_logs2, l)
    return jnp.where(valid, l, 0.0)


# ---------------------------------- main ------------------------------------
if __name__ == "__main__":
    key = jax.random.PRNGKey(0)
    k_x, k_t = jax.random.split(key)

    B, A, C, D, E = 2, 4, 4, 4, 4
    xi, ti = [1], [1]

    x_all = jax.random.normal(k_x, (B, A, C, D, E), dtype=jnp.float32)
    # targets mostly in [0, 1) with some negatives to exercise the t >= 0 mask
    t_all = jax.random.uniform(k_t, (B, A, C, D, E), jnp.float32,
                               minval=-0.2, maxval=1.0)

    out = bce_forward(x_all, t_all, xi=xi, ti=ti)
    out = jax.block_until_ready(out)

    ref = _reference_dense(x_all, t_all, xi, ti)
    assert out.shape == (B, A, C, D, 1), out.shape
    max_err = float(jnp.max(jnp.abs(out[..., 0].astype(jnp.float32) - ref)))
    # tolerance loosened slightly for the EUP approximate reciprocal path
    assert jnp.allclose(out[..., 0].astype(jnp.float32), ref,
                        atol=5e-3, rtol=5e-3), max_err

    print("KERNEL_OK")
</pallas_src>

<mosaic_0001>
module attributes {stable_mosaic.version = 11 : i64} {
  func.func @_bce_kernel(%arg0: i32, %arg1: memref<16x512xf32, #tpu.memory_space<vmem>>, %arg2: memref<16x512xf32, #tpu.memory_space<vmem>>, %arg3: memref<16x512xf32, #tpu.memory_space<vmem>>, %arg4: memref<16x512xf32, #tpu.memory_space<vmem>>) attributes {dimension_semantics = [#tpu.dimension_semantics<parallel>], iteration_bounds = array<i64: 1>, scalar_prefetch = 0 : i64, scratch_operands = 0 : i64, tpu.core_type = #tpu.core_type<tc>, window_params = [{transform_indices = @transform_0, window_bounds = array<i64: 16, 512>}, {transform_indices = @transform_1, window_bounds = array<i64: 16, 512>}, {transform_indices = @transform_2, window_bounds = array<i64: 16, 512>}, {transform_indices = @transform_3, window_bounds = array<i64: 16, 512>}]} {
    %c0 = arith.constant 0 : index
    %c0_0 = arith.constant 0 : index
    %0 = vector.load %arg1[%c0, %c0_0] : memref<16x512xf32, #tpu.memory_space<vmem>>, vector<16x512xf32>
    %c0_1 = arith.constant 0 : index
    %c0_2 = arith.constant 0 : index
    %1 = vector.load %arg2[%c0_1, %c0_2] : memref<16x512xf32, #tpu.memory_space<vmem>>, vector<16x512xf32>
    %c0_3 = arith.constant 0 : index
    %c0_4 = arith.constant 0 : index
    %2 = vector.load %arg3[%c0_3, %c0_4] : memref<16x512xf32, #tpu.memory_space<vmem>>, vector<16x512xf32>
    %cst = arith.constant 0.000000e+00 : f32
    %3 = vector.broadcast %cst : f32 to vector<16x512xf32>
    %4 = arith.cmpf ogt, %1, %3 : vector<16x512xf32>
    %cst_5 = arith.constant 0.000000e+00 : f32
    %5 = vector.broadcast %cst_5 : f32 to vector<16x512xf32>
    %6 = arith.cmpf oge, %1, %5 : vector<16x512xf32>
    %cst_6 = arith.constant 1.000000e+00 : f32
    %cst_7 = arith.constant -1.000000e+00 : f32
    %7 = vector.broadcast %cst_6 : f32 to vector<16x512xf32>
    %8 = vector.broadcast %cst_7 : f32 to vector<16x512xf32>
    %9 = arith.select %4, %7, %8 : vector<16x512xi1>, vector<16x512xf32>
    %10 = arith.mulf %9, %0 : vector<16x512xf32>
    %cst_8 = arith.constant -8.000000e+01 : f32
    %11 = vector.broadcast %cst_8 : f32 to vector<16x512xf32>
    %12 = arith.maximumf %10, %11 : vector<16x512xf32>
    %cst_9 = arith.constant 0.000000e+00 : f32
    %13 = vector.broadcast %cst_9 : f32 to vector<16x512xf32>
    %14 = arith.subf %13, %12 : vector<16x512xf32>
    %15 = math.exp %14 : vector<16x512xf32>
    %cst_10 = arith.constant 1.000000e+00 : f32
    %16 = vector.broadcast %cst_10 : f32 to vector<16x512xf32>
    %17 = arith.addf %16, %15 : vector<16x512xf32>
    %18 = tpu.reciprocal %17 {approx = true} : vector<16x512xf32> -> vector<16x512xf32>
    %19 = arith.mulf %15, %18 : vector<16x512xf32>
    %20 = math.log1p %15 : vector<16x512xf32>
    %21 = arith.mulf %18, %20 : vector<16x512xf32>
    %22 = arith.addf %19, %21 : vector<16x512xf32>
    %cst_11 = arith.constant 5.000000e-01 : f32
    %23 = vector.broadcast %cst_11 : f32 to vector<16x512xf32>
    %24 = arith.mulf %23, %22 : vector<16x512xf32>
    %25 = arith.mulf %19, %24 : vector<16x512xf32>
    %cst_12 = arith.constant 1.000000e+00 : f32
    %26 = vector.broadcast %cst_12 : f32 to vector<16x512xf32>
    %27 = arith.cmpf olt, %25, %26 : vector<16x512xf32>
    %cst_13 = arith.constant 5.000000e-01 : f32
    %28 = vector.broadcast %cst_13 : f32 to vector<16x512xf32>
    %29 = arith.mulf %28, %25 : vector<16x512xf32>
    %30 = arith.mulf %29, %25 : vector<16x512xf32>
    %cst_14 = arith.constant 5.000000e-01 : f32
    %31 = vector.broadcast %cst_14 : f32 to vector<16x512xf32>
    %32 = arith.subf %25, %31 : vector<16x512xf32>
    %33 = arith.select %27, %30, %32 : vector<16x512xi1>, vector<16x512xf32>
    %cst_15 = arith.constant dense<true> : vector<16x512xi1>
    %34 = arith.xori %6, %cst_15 : vector<16x512xi1>
    %cst_16 = arith.constant -1.500000e+01 : f32
    %35 = vector.broadcast %cst_16 : f32 to vector<16x512xf32>
    %36 = arith.cmpf olt, %0, %35 : vector<16x512xf32>
    %cst_17 = arith.constant dense<true> : vector<16x512xi1>
    %37 = arith.xori %4, %cst_17 : vector<16x512xi1>
    %38 = arith.andi %36, %37 : vector<16x512xi1>
    %39 = arith.ori %34, %38 : vector<16x512xi1>
    %cst_18 = arith.constant 0.000000e+00 : f32
    %40 = vector.broadcast %cst_18 : f32 to vector<16x512xf32>
    %41 = arith.select %39, %40, %33 : vector<16x512xi1>, vector<16x512xf32>
    %cst_19 = arith.constant 5.000000e+00 : f32
    %42 = vector.broadcast %cst_19 : f32 to vector<16x512xf32>
    %43 = arith.cmpf ogt, %41, %42 : vector<16x512xf32>
    %cst_20 = arith.constant 4.000000e+00 : f32
    %44 = vector.broadcast %cst_20 : f32 to vector<16x512xf32>
    %45 = arith.subf %41, %44 : vector<16x512xf32>
    %46 = math.log %45 : vector<16x512xf32>
    %cst_21 = arith.constant 5.000000e+00 : f32
    %47 = vector.broadcast %cst_21 : f32 to vector<16x512xf32>
    %48 = arith.addf %47, %46 : vector<16x512xf32>
    %49 = arith.select %43, %48, %41 : vector<16x512xi1>, vector<16x512xf32>
    %cst_22 = arith.constant 0.333333343 : f32
    %50 = vector.broadcast %cst_22 : f32 to vector<16x512xf32>
    %51 = arith.mulf %2, %50 : vector<16x512xf32>
    %52 = math.tanh %51 : vector<16x512xf32>
    %cst_23 = arith.constant 3.000000e+00 : f32
    %53 = vector.broadcast %cst_23 : f32 to vector<16x512xf32>
    %54 = arith.mulf %53, %52 : vector<16x512xf32>
    %cst_24 = arith.constant 5.000000e-01 : f32
    %55 = vector.broadcast %cst_24 : f32 to vector<16x512xf32>
    %56 = arith.mulf %55, %49 : vector<16x512xf32>
    %cst_25 = arith.constant 0.000000e+00 : f32
    %57 = vector.broadcast %cst_25 : f32 to vector<16x512xf32>
    %58 = arith.subf %57, %54 : vector<16x512xf32>
    %59 = math.exp %58 : vector<16x512xf32>
    %60 = arith.mulf %56, %59 : vector<16x512xf32>
    %cst_26 = arith.constant 5.000000e-01 : f32
    %61 = vector.broadcast %cst_26 : f32 to vector<16x512xf32>
    %62 = arith.mulf %61, %54 : vector<16x512xf32>
    %63 = arith.addf %60, %62 : vector<16x512xf32>
    %64 = arith.select %4, %63, %49 : vector<16x512xi1>, vector<16x512xf32>
    %c0_27 = arith.constant 0 : index
    %c0_28 = arith.constant 0 : index
    %65 = vector.load %arg4[%c0_27, %c0_28] : memref<16x512xf32, #tpu.memory_space<vmem>>, vector<16x512xf32>
    tpu.vector_store %arg4[%c0_27, %c0_28], %64 {strides = array<i32>} : memref<16x512xf32, #tpu.memory_space<vmem>>, vector<16x512xf32>,
    return
  }
  func.func @transform_0(%arg0: i32) -> (i32, i32) {
    %c0_i32 = arith.constant 0 : i32
    %c0_i32_0 = arith.constant 0 : i32
    return %arg0, %c0_i32 : i32, i32
  }
  func.func @transform_1(%arg0: i32) -> (i32, i32) {
    %c0_i32 = arith.constant 0 : i32
    %c0_i32_0 = arith.constant 0 : i32
    return %arg0, %c0_i32 : i32, i32
  }
  func.func @transform_2(%arg0: i32) -> (i32, i32) {
    %c0_i32 = arith.constant 0 : i32
    %c0_i32_0 = arith.constant 0 : i32
    return %arg0, %c0_i32 : i32, i32
  }
  func.func @transform_3(%arg0: i32) -> (i32, i32) {
    %c0_i32 = arith.constant 0 : i32
    %c0_i32_0 = arith.constant 0 : i32
    return %arg0, %c0_i32 : i32, i32
  }
}

</mosaic_0001>

<llo_original>
// kernel: squeeze.4
$region0: #{squeeze.4}
  %s0 = inlined_call_operand.vmem [shape: f32[2,4,4,4], index: 0, kind: input, shape index: {}]
  %s1 = inlined_call_operand.vmem [shape: f32[128], index: 1, kind: output, shape index: {}]
  $region1: #{squeeze.4} parent=0
    #allocation0 [shape = 'u8[4096]{0}', space=vmem, size = 0x1000, scoped, tag = 'scoped mem for output reshape']
    #allocation1 [shape = 'u8[32768]{0}', space=vmem, size = 0x8000, scoped, tag = 'scoped mem for input reshape']
    %s3 = sshll.u32 1, 4
    %s4 = ssub.s32 %s3, 1
    %s5 = smul.addr 4, 7
    %s6 = scalar_lea.vmem %s0, %s5
    %v7 = vld [vmem:[%s6] sm:%s4]
    %s8 = scalar_lea.vmem [#allocation1], 56
    %9 = vst [vmem:[%s8] sm:%s4] %v7
    %s10 = smul.addr 4, 6
    %s11 = scalar_lea.vmem %s0, %s10
    %v12 = vld [vmem:[%s11] sm:%s4]
    %s13 = scalar_lea.vmem [#allocation1], 48
    %14 = vst [vmem:[%s13] sm:%s4] %v12
    %s15 = smul.addr 4, 5
    %s16 = scalar_lea.vmem %s0, %s15
    %v17 = vld [vmem:[%s16] sm:%s4]
    %s18 = scalar_lea.vmem [#allocation1], 40
    %19 = vst [vmem:[%s18] sm:%s4] %v17
    %s20 = smul.addr 4, 4
    %s21 = scalar_lea.vmem %s0, %s20
    %v22 = vld [vmem:[%s21] sm:%s4]
    %s23 = scalar_lea.vmem [#allocation1], 32
    %24 = vst [vmem:[%s23] sm:%s4] %v22
    %s25 = smul.addr 4, 3
    %s26 = scalar_lea.vmem %s0, %s25
    %v27 = vld [vmem:[%s26] sm:%s4]
    %s28 = scalar_lea.vmem [#allocation1], 24
    %29 = vst [vmem:[%s28] sm:%s4] %v27
    %s30 = smul.addr 4, 2
    %s31 = scalar_lea.vmem %s0, %s30
    %v32 = vld [vmem:[%s31] sm:%s4]
    %s33 = scalar_lea.vmem [#allocation1], 16
    %34 = vst [vmem:[%s33] sm:%s4] %v32
    %s35 = scalar_lea.vmem %s0, 4
    %v36 = vld [vmem:[%s35] sm:%s4]
    %s37 = scalar_lea.vmem [#allocation1], 8
    %38 = vst [vmem:[%s37] sm:%s4] %v36
    %v39 = vld [vmem:[%s0] sm:%s4]
    %40 = vst [vmem:[#allocation1] sm:%s4] %v39
    %v41 = vld [vmem:[#allocation1] sm:$0x1]
    %vm42 = vcmask 31744
    %43 = vst.msk [vmem:[#allocation0] sm:$0x1] %vm42, %v41
    %s44 = scalar_lea.vmem [#allocation1], 59
    %v45 = vld [vmem:[%s44] sm:$0x1]
    %46 = vrot.lane.b32.xlu0 %v45, 124
    %v47 = vpop.permute.xlu0 %46
    %vm48 = vcmask 1048544
    %49 = vst.msk [vmem:[#allocation0] sm:$0x1] %vm48, %v47
    %s50 = scalar_lea.vmem [#allocation1], 58
    %v51 = vld [vmem:[%s50] sm:$0x1]
    %52 = vrot.lane.b32.xlu0 %v51, 120
    %v53 = vpop.permute.xlu0 %52
    %vm54 = vcmask 1015744
    %55 = vst.msk [vmem:[#allocation0] sm:$0x1] %vm54, %v53
    %s56 = scalar_lea.vmem [#allocation1], 57
    %v57 = vld [vmem:[%s56] sm:$0x1]
    %58 = vrot.lane.b32.xlu0 %v57, 116
    %v59 = vpop.permute.xlu0 %58
    %vm60 = vcmask 982944
    %61 = vst.msk [vmem:[#allocation0] sm:$0x1] %vm60, %v59
    %s62 = scalar_lea.vmem [#allocation1], 56
    %v63 = vld [vmem:[%s62] sm:$0x1]
    %64 = vrot.lane.b32.xlu0 %v63, 112
    %v65 = vpop.permute.xlu0 %64
    %vm66 = vcmask 950144
    %67 = vst.msk [vmem:[#allocation0] sm:$0x1] %vm66, %v65
    %s68 = scalar_lea.vmem [#allocation1], 51
    %v69 = vld [vmem:[%s68] sm:$0x1]
    %70 = vrot.lane.b32.xlu0 %v69, 108
    %v71 = vpop.permute.xlu0 %70
    %vm72 = vcmask 917344
    %73 = vst.msk [vmem:[#allocation0] sm:$0x1] %vm72, %v71
    %s74 = scalar_lea.vmem [#allocation1], 50
    %v75 = vld [vmem:[%s74] sm:$0x1]
    %76 = vrot.lane.b32.xlu0 %v75, 104
    %v77 = vpop.permute.xlu0 %76
    %vm78 = vcmask 884544
    %79 = vst.msk [vmem:[#allocation0] sm:$0x1] %vm78, %v77
    %s80 = scalar_lea.vmem [#allocation1], 49
    %v81 = vld [vmem:[%s80] sm:$0x1]
    %82 = vrot.lane.b32.xlu0 %v81, 100
    %v83 = vpop.permute.xlu0 %82
    %vm84 = vcmask 851744
    %85 = vst.msk [vmem:[#allocation0] sm:$0x1] %vm84, %v83
    %s86 = scalar_lea.vmem [#allocation1], 48
    %v87 = vld [vmem:[%s86] sm:$0x1]
    %88 = vrot.lane.b32.xlu0 %v87, 96
    %v89 = vpop.permute.xlu0 %88
    %vm90 = vcmask 818944
    %91 = vst.msk [vmem:[#allocation0] sm:$0x1] %vm90, %v89
    %s92 = scalar_lea.vmem [#allocation1], 43
    %v93 = vld [vmem:[%s92] sm:$0x1]
    %94 = vrot.lane.b32.xlu0 %v93, 92
    %v95 = vpop.permute.xlu0 %94
    %vm96 = vcmask 786144
    %97 = vst.msk [vmem:[#allocation0] sm:$0x1] %vm96, %v95
    %s98 = scalar_lea.vmem [#allocation1], 42
    %v99 = vld [vmem:[%s98] sm:$0x1]
    %100 = vrot.lane.b32.xlu0 %v99, 88
    %v101 = vpop.permute.xlu0 %100
    %vm102 = vcmask 753344
    %103 = vst.msk [vmem:[#allocation0] sm:$0x1] %vm102, %v101
    %s104 = scalar_lea.vmem [#allocation1], 41
    %v105 = vld [vmem:[%s104] sm:$0x1]
    %106 = vrot.lane.b32.xlu0 %v105, 84
    %v107 = vpop.permute.xlu0 %106
    %vm108 = vcmask 720544
    %109 = vst.msk [vmem:[#allocation0] sm:$0x1] %vm108, %v107
    %s110 = scalar_lea.vmem [#allocation1], 40
    %v111 = vld [vmem:[%s110] sm:$0x1]
    %112 = vrot.lane.b32.xlu0 %v111, 80
    %v113 = vpop.permute.xlu0 %112
    %vm114 = vcmask 687744
    %115 = vst.msk [vmem:[#allocation0] sm:$0x1] %vm114, %v113
    %s116 = scalar_lea.vmem [#allocation1], 35
    %v117 = vld [vmem:[%s116] sm:$0x1]
    %118 = vrot.lane.b32.xlu0 %v117, 76
    %v119 = vpop.permute.xlu0 %118
    %vm120 = vcmask 654944
    %121 = vst.msk [vmem:[#allocation0] sm:$0x1] %vm120, %v119
    %s122 = scalar_lea.vmem [#allocation1], 34
    %v123 = vld [vmem:[%s122] sm:$0x1]
    %124 = vrot.lane.b32.xlu0 %v123, 72
    %v125 = vpop.permute.xlu0 %124
    %vm126 = vcmask 622144
    %127 = vst.msk [vmem:[#allocation0] sm:$0x1] %vm126, %v125
    %s128 = scalar_lea.vmem [#allocation1], 33
    %v129 = vld [vmem:[%s128] sm:$0x1]
    %130 = vrot.lane.b32.xlu0 %v129, 68
    %v131 = vpop.permute.xlu0 %130
    %vm132 = vcmask 589344
    %133 = vst.msk [vmem:[#allocation0] sm:$0x1] %vm132, %v131
    %s134 = scalar_lea.vmem [#allocation1], 32
    %v135 = vld [vmem:[%s134] sm:$0x1]
    %136 = vrot.lane.b32.xlu0 %v135, 64
    %v137 = vpop.permute.xlu0 %136
    %vm138 = vcmask 556544
    %139 = vst.msk [vmem:[#allocation0] sm:$0x1] %vm138, %v137
    %s140 = scalar_lea.vmem [#allocation1], 27
    %v141 = vld [vmem:[%s140] sm:$0x1]
    %142 = vrot.lane.b32.xlu0 %v141, 60
    %v143 = vpop.permute.xlu0 %142
    %vm144 = vcmask 523744
    %145 = vst.msk [vmem:[#allocation0] sm:$0x1] %vm144, %v143
    %s146 = scalar_lea.vmem [#allocation1], 26
    %v147 = vld [vmem:[%s146] sm:$0x1]
    %148 = vrot.lane.b32.xlu0 %v147, 56
    %v149 = vpop.permute.xlu0 %148
    %vm150 = vcmask 490944
    %151 = vst.msk [vmem:[#allocation0] sm:$0x1] %vm150, %v149
    %s152 = scalar_lea.vmem [#allocation1], 25
    %v153 = vld [vmem:[%s152] sm:$0x1]
    %154 = vrot.lane.b32.xlu0 %v153, 52
    %v155 = vpop.permute.xlu0 %154
    %vm156 = vcmask 458144
    %157 = vst.msk [vmem:[#allocation0] sm:$0x1] %vm156, %v155
    %s158 = scalar_lea.vmem [#allocation1], 24
    %v159 = vld [vmem:[%s158] sm:$0x1]
    %160 = vrot.lane.b32.xlu0 %v159, 48
    %v161 = vpop.permute.xlu0 %160
    %vm162 = vcmask 425344
    %163 = vst.msk [vmem:[#allocation0] sm:$0x1] %vm162, %v161
    %s164 = scalar_lea.vmem [#allocation1], 19
    %v165 = vld [vmem:[%s164] sm:$0x1]
    %166 = vrot.lane.b32.xlu0 %v165, 44
    %v167 = vpop.permute.xlu0 %166
    %vm168 = vcmask 392544
    %169 = vst.msk [vmem:[#allocation0] sm:$0x1] %vm168, %v167
    %s170 = scalar_lea.vmem [#allocation1], 18
    %v171 = vld [vmem:[%s170] sm:$0x1]
    %172 = vrot.lane.b32.xlu0 %v171, 40
    %v173 = vpop.permute.xlu0 %172
    %vm174 = vcmask 359744
    %175 = vst.msk [vmem:[#allocation0] sm:$0x1] %vm174, %v173
    %s176 = scalar_lea.vmem [#allocation1], 17
    %v177 = vld [vmem:[%s176] sm:$0x1]
    %178 = vrot.lane.b32.xlu0 %v177, 36
    %v179 = vpop.permute.xlu0 %178
    %vm180 = vcmask 326944
    %181 = vst.msk [vmem:[#allocation0] sm:$0x1] %vm180, %v179
    %s182 = scalar_lea.vmem [#allocation1], 16
    %v183 = vld [vmem:[%s182] sm:$0x1]
    %184 = vrot.lane.b32.xlu0 %v183, 32
    %v185 = vpop.permute.xlu0 %184
    %vm186 = vcmask 294144
    %187 = vst.msk [vmem:[#allocation0] sm:$0x1] %vm186, %v185
    %s188 = scalar_lea.vmem [#allocation1], 11
    %v189 = vld [vmem:[%s188] sm:$0x1]
    %190 = vrot.lane.b32.xlu0 %v189, 28
    %v191 = vpop.permute.xlu0 %190
    %vm192 = vcmask 261344
    %193 = vst.msk [vmem:[#allocation0] sm:$0x1] %vm192, %v191
    %s194 = scalar_lea.vmem [#allocation1], 10
    %v195 = vld [vmem:[%s194] sm:$0x1]
    %196 = vrot.lane.b32.xlu0 %v195, 24
    %v197 = vpop.permute.xlu0 %196
    %vm198 = vcmask 228544
    %199 = vst.msk [vmem:[#allocation0] sm:$0x1] %vm198, %v197
    %s200 = scalar_lea.vmem [#allocation1], 9
    %v201 = vld [vmem:[%s200] sm:$0x1]
    %202 = vrot.lane.b32.xlu0 %v201, 20
    %v203 = vpop.permute.xlu0 %202
    %vm204 = vcmask 195744
    %205 = vst.msk [vmem:[#allocation0] sm:$0x1] %vm204, %v203
    %s206 = scalar_lea.vmem [#allocation1], 8
    %v207 = vld [vmem:[%s206] sm:$0x1]
    %208 = vrot.lane.b32.xlu0 %v207, 16
    %v209 = vpop.permute.xlu0 %208
    %vm210 = vcmask 162944
    %211 = vst.msk [vmem:[#allocation0] sm:$0x1] %vm210, %v209
    %s212 = scalar_lea.vmem [#allocation1], 3
    %v213 = vld [vmem:[%s212] sm:$0x1]
    %214 = vrot.lane.b32.xlu0 %v213, 12
    %v215 = vpop.permute.xlu0 %214
    %vm216 = vcmask 130144
    %217 = vst.msk [vmem:[#allocation0] sm:$0x1] %vm216, %v215
    %s218 = scalar_lea.vmem [#allocation1], 2
    %v219 = vld [vmem:[%s218] sm:$0x1]
    %220 = vrot.lane.b32.xlu0 %v219, 8
    %v221 = vpop.permute.xlu0 %220
    %vm222 = vcmask 97344
    %223 = vst.msk [vmem:[#allocation0] sm:$0x1] %vm222, %v221
    %s224 = scalar_lea.vmem [#allocation1], 1
    %v225 = vld [vmem:[%s224] sm:$0x1]
    %226 = vrot.lane.b32.xlu0 %v225, 4
    %v227 = vpop.permute.xlu0 %226
    %vm228 = vcmask 64544
    %229 = vst.msk [vmem:[#allocation0] sm:$0x1] %vm228, %v227
    %s231 = sshll.u32 1, 1
    %s232 = ssub.s32 %s231, 1
    %v234 = vld [vmem:[#allocation0] sm:%s232]
    %s235 = sshll.u32 1, 1
    %s236 = ssub.s32 %s235, 1
    %237 = vst [vmem:[%s1] sm:%s236] %v234

// kernel: _bce_forward_impl.1
$region0: #{_bce_forward_impl.1}
  #allocation0 [shape = 'u32[]', space=smem, size = 0x4, offset = 0x4, fixed_abs, tag = 'smem constant byte address 0x4 - core index']
  #allocation1 [shape = 'u32[144,128]{1,0:T(1,128)}', space=vmem, size = 0x12000, scoped, tag = 'internal scratch']
  %s0 = inlined_call_operand.vmem [shape: f32[16,512], index: 0, kind: input, shape index: {}]
  %s1 = inlined_call_operand.vmem [shape: f32[16,512], index: 1, kind: input, shape index: {}]
  %s2 = inlined_call_operand.vmem [shape: f32[16,512], index: 2, kind: input, shape index: {}]
  %s3 = inlined_call_operand.vmem [shape: f32[16,512], index: 3, kind: output, shape index: {}]
  %s4 = sld [smem:[#allocation0]]
  $region22: #{_bce_forward_impl.1} parent=0
    _
  %s6 = ssub.s32 1, %s4
  %s7 = scalar_select 0, %s6, %s4
  // Predicated region
  $region2: #{_bce_forward_impl.1} parent=0 // pred_check
    _
  $region3: #{_bce_forward_impl.1} parent=0 // pred_check_branch
    %9 = sbr.rel (0) target = $region5
  $region4: #{_bce_forward_impl.1} parent=0 // pred_region
    _
  $region5: #{_bce_forward_impl.1} parent=0 // pred_fallthru
    _
  // Predicated region
  $region6: #{_bce_forward_impl.1} parent=0 // pred_check
    _
  $region7: #{_bce_forward_impl.1} parent=0 // pred_check_branch
    %11 = sbr.rel (0) target = $region9
  $region8: #{_bce_forward_impl.1} parent=0 // pred_region
    _
  $region9: #{_bce_forward_impl.1} parent=0 // pred_fallthru
    _
  // Predicated region
  $region10: #{_bce_forward_impl.1} parent=0 // pred_check
    _
  $region11: #{_bce_forward_impl.1} parent=0 // pred_check_branch
    %13 = sbr.rel (0) target = $region13
  $region12: #{_bce_forward_impl.1} parent=0 // pred_region
    _
  $region13: #{_bce_forward_impl.1} parent=0 // pred_fallthru
    _
  %v14 = vld [vmem:[%s0] sm:$0xff]
  %v15 = vld [vmem:[%s0 + $0x8] sm:$0xff]
  %v16 = vld [vmem:[%s0 + $0x10] sm:$0xff]
  %v17 = vld [vmem:[%s0 + $0x18] sm:$0xff]
  %v18 = vld [vmem:[%s0 + $0x20] sm:$0xff]
  %v19 = vld [vmem:[%s0 + $0x28] sm:$0xff]
  %v20 = vld [vmem:[%s0 + $0x30] sm:$0xff]
  %v21 = vld [vmem:[%s0 + $0x38] sm:$0xff]
  %v22 = vld [vmem:[%s1] sm:$0xff]
  %v23 = vld [vmem:[%s1 + $0x8] sm:$0xff]
  %v24 = vld [vmem:[%s1 + $0x10] sm:$0xff]
  %v25 = vld [vmem:[%s1 + $0x18] sm:$0xff]
  %v26 = vld [vmem:[%s1 + $0x20] sm:$0xff]
  %v27 = vld [vmem:[%s1 + $0x28] sm:$0xff]
  %v28 = vld [vmem:[%s1 + $0x30] sm:$0xff]
  %v29 = vld [vmem:[%s1 + $0x38] sm:$0xff]
  %v30 = vld [vmem:[%s2] sm:$0xff]
  %v31 = vld [vmem:[%s2 + $0x8] sm:$0xff]
  %v32 = vld [vmem:[%s2 + $0x10] sm:$0xff]
  %v33 = vld [vmem:[%s2 + $0x18] sm:$0xff]
  %v34 = vld [vmem:[%s2 + $0x20] sm:$0xff]
  %v35 = vld [vmem:[%s2 + $0x28] sm:$0xff]
  %v36 = vld [vmem:[%s2 + $0x30] sm:$0xff]
  %v37 = vld [vmem:[%s2 + $0x38] sm:$0xff]
  %vm38 = vcmp.gt.f32.partialorder %v22, 0.0
  %vm39 = vcmp.gt.f32.partialorder %v23, 0.0
  %vm40 = vcmp.gt.f32.partialorder %v24, 0.0
  %vm41 = vcmp.gt.f32.partialorder %v25, 0.0
  %vm42 = vcmp.gt.f32.partialorder %v26, 0.0
  %vm43 = vcmp.gt.f32.partialorder %v27, 0.0
  %vm44 = vcmp.gt.f32.partialorder %v28, 0.0
  %vm45 = vcmp.gt.f32.partialorder %v29, 0.0
  %vm46 = vcmp.ge.f32.partialorder %v22, 0.0
  %vm47 = vcmp.ge.f32.partialorder %v23, 0.0
  %vm48 = vcmp.ge.f32.partialorder %v24, 0.0
  %vm49 = vcmp.ge.f32.partialorder %v25, 0.0
  %vm50 = vcmp.ge.f32.partialorder %v26, 0.0
  %vm51 = vcmp.ge.f32.partialorder %v27, 0.0
  %vm52 = vcmp.ge.f32.partialorder %v28, 0.0
  %vm53 = vcmp.ge.f32.partialorder %v29, 0.0
  %v54 = vsel %vm38, 1.0, -1.0
  %v55 = vsel %vm39, 1.0, -1.0
  %v56 = vsel %vm40, 1.0, -1.0
  %v57 = vsel %vm41, 1.0, -1.0
  %v58 = vsel %vm42, 1.0, -1.0
  %v59 = vsel %vm43, 1.0, -1.0
  %v60 = vsel %vm44, 1.0, -1.0
  %v61 = vsel %vm45, 1.0, -1.0
  %v62 = vmul.f32 %v54, %v14
  %v63 = vmul.f32 %v55, %v15
  %v64 = vmul.f32 %v56, %v16
  %v65 = vmul.f32 %v57, %v17
  %v66 = vmul.f32 %v58, %v18
  %v67 = vmul.f32 %v59, %v19
  %v68 = vmul.f32 %v60, %v20
  %v69 = vmul.f32 %v61, %v21
  %v70 = vmax.f32 %v62, -80.0
  %v71 = vmax.f32 %v63, -80.0
  %v72 = vmax.f32 %v64, -80.0
  %v73 = vmax.f32 %v65, -80.0
  %v74 = vmax.f32 %v66, -80.0
  %v75 = vmax.f32 %v67, -80.0
  %v76 = vmax.f32 %v68, -80.0
  %v77 = vmax.f32 %v69, -80.0
  %v78 = vsub.f32 0.0, %v70
  %v79 = vsub.f32 0.0, %v71
  %v80 = vsub.f32 0.0, %v72
  %v81 = vsub.f32 0.0, %v73
  %v82 = vsub.f32 0.0, %v74
  %v83 = vsub.f32 0.0, %v75
  %v84 = vsub.f32 0.0, %v76
  %v85 = vsub.f32 0.0, %v77
  %v86 = vmul.f32 %v78, 1.442695
  %v87 = vpow.pop %v86
  %v88 = vmul.f32 %v79, 1.442695
  %v89 = vpow.pop %v88
  %v90 = vmul.f32 %v80, 1.442695
  %v91 = vpow.pop %v90
  %v92 = vmul.f32 %v81, 1.442695
  %v93 = vpow.pop %v92
  %v94 = vmul.f32 %v82, 1.442695
  %v95 = vpow.pop %v94
  %v96 = vmul.f32 %v83, 1.442695
  %v97 = vpow.pop %v96
  %v98 = vmul.f32 %v84, 1.442695
  %v99 = vpow.pop %v98
  %v100 = vmul.f32 %v85, 1.442695
  %v101 = vpow.pop %v100
  %v102 = vadd.f32 %v87, 1.0
  %v103 = vadd.f32 %v89, 1.0
  %v104 = vadd.f32 %v91, 1.0
  %v105 = vadd.f32 %v93, 1.0
  %v106 = vadd.f32 %v95, 1.0
  %v107 = vadd.f32 %v97, 1.0
  %v108 = vadd.f32 %v99, 1.0
  %v109 = vadd.f32 %v101, 1.0
  %v110 = vrcp.pop %v102
  %v111 = vrcp.pop %v103
  %v112 = vrcp.pop %v104
  %v113 = vrcp.pop %v105
  %v114 = vrcp.pop %v106
  %v115 = vrcp.pop %v107
  %v116 = vrcp.pop %v108
  %v117 = vrcp.pop %v109
  %v118 = vmul.f32 %v87, %v110
  %v119 = vmul.f32 %v89, %v111
  %v120 = vmul.f32 %v91, %v112
  %v121 = vmul.f32 %v93, %v113
  %v122 = vmul.f32 %v95, %v114
  %v123 = vmul.f32 %v97, %v115
  %v124 = vmul.f32 %v99, %v116
  %v125 = vmul.f32 %v101, %v117
  %v126 = vadd.f32 %v87, 1.0
  %v127 = vlog2.pop %v126
  %v128 = vmul.f32 %v127, 0.6931472
  %v129 = vmul.f32 -0.5, %v87
  %v130 = vadd.f32 %v129, 1.0
  %v131 = vmul.f32 %v130, %v87
  %v132 = vand.u32 2147483647, %v87
  %vm133 = vcmp.lt.f32.partialorder %v132, 0.0004427343
  %v134 = vsel %vm133, %v131, %v128
  %v135 = vadd.f32 %v89, 1.0
  %v136 = vlog2.pop %v135
  %v137 = vmul.f32 %v136, 0.6931472
  %v138 = vmul.f32 -0.5, %v89
  %v139 = vadd.f32 %v138, 1.0
  %v140 = vmul.f32 %v139, %v89
  %v141 = vand.u32 2147483647, %v89
  %vm142 = vcmp.lt.f32.partialorder %v141, 0.0004427343
  %v143 = vsel %vm142, %v140, %v137
  %v144 = vadd.f32 %v91, 1.0
  %v145 = vlog2.pop %v144
  %v146 = vmul.f32 %v145, 0.6931472
  %v147 = vmul.f32 -0.5, %v91
  %v148 = vadd.f32 %v147, 1.0
  %v149 = vmul.f32 %v148, %v91
  %v150 = vand.u32 2147483647, %v91
  %vm151 = vcmp.lt.f32.partialorder %v150, 0.0004427343
  %v152 = vsel %vm151, %v149, %v146
  %v153 = vadd.f32 %v93, 1.0
  %v154 = vlog2.pop %v153
  %v155 = vmul.f32 %v154, 0.6931472
  %v156 = vmul.f32 -0.5, %v93
  %v157 = vadd.f32 %v156, 1.0
  %v158 = vmul.f32 %v157, %v93
  %v159 = vand.u32 2147483647, %v93
  %vm160 = vcmp.lt.f32.partialorder %v159, 0.0004427343
  %v161 = vsel %vm160, %v158, %v155
  %v162 = vadd.f32 %v95, 1.0
  %v163 = vlog2.pop %v162
  %v164 = vmul.f32 %v163, 0.6931472
  %v165 = vmul.f32 -0.5, %v95
  %v166 = vadd.f32 %v165, 1.0
  %v167 = vmul.f32 %v166, %v95
  %v168 = vand.u32 2147483647, %v95
  %vm169 = vcmp.lt.f32.partialorder %v168, 0.0004427343
  %v170 = vsel %vm169, %v167, %v164
  %v171 = vadd.f32 %v97, 1.0
  %v172 = vlog2.pop %v171
  %v173 = vmul.f32 %v172, 0.6931472
  %v174 = vmul.f32 -0.5, %v97
  %v175 = vadd.f32 %v174, 1.0
  %v176 = vmul.f32 %v175, %v97
  %v177 = vand.u32 2147483647, %v97
  %vm178 = vcmp.lt.f32.partialorder %v177, 0.0004427343
  %v179 = vsel %vm178, %v176, %v173
  %v180 = vadd.f32 %v99, 1.0
  %v181 = vlog2.pop %v180
  %v182 = vmul.f32 %v181, 0.6931472
  %v183 = vmul.f32 -0.5, %v99
  %v184 = vadd.f32 %v183, 1.0
  %v185 = vmul.f32 %v184, %v99
  %v186 = vand.u32 2147483647, %v99
  %vm187 = vcmp.lt.f32.partialorder %v186, 0.0004427343
  %v188 = vsel %vm187, %v185, %v182
  %v189 = vadd.f32 %v101, 1.0
  %v190 = vlog2.pop %v189
  %v191 = vmul.f32 %v190, 0.6931472
  %v192 = vmul.f32 -0.5, %v101
  %v193 = vadd.f32 %v192, 1.0
  %v194 = vmul.f32 %v193, %v101
  %v195 = vand.u32 2147483647, %v101
  %vm196 = vcmp.lt.f32.partialorder %v195, 0.0004427343
  %v197 = vsel %vm196, %v194, %v191
  %v198 = vmul.f32 %v110, %v134
  %v199 = vmul.f32 %v111, %v143
  %v200 = vmul.f32 %v112, %v152
  %v201 = vmul.f32 %v113, %v161
  %v202 = vmul.f32 %v114, %v170
  %v203 = vmul.f32 %v115, %v179
  %v204 = vmul.f32 %v116, %v188
  %v205 = vmul.f32 %v117, %v197
  %v206 = vadd.f32 %v118, %v198
  %v207 = vadd.f32 %v119, %v199
  %v208 = vadd.f32 %v120, %v200
  %v209 = vadd.f32 %v121, %v201
  %v210 = vadd.f32 %v122, %v202
  %v211 = vadd.f32 %v123, %v203
  %v212 = vadd.f32 %v124, %v204
  %v213 = vadd.f32 %v125, %v205
  %v214 = vmul.f32 %v206, 0.5
  %v215 = vmul.f32 %v207, 0.5
  %v216 = vmul.f32 %v208, 0.5
  %v217 = vmul.f32 %v209, 0.5
  %v218 = vmul.f32 %v210, 0.5
  %v219 = vmul.f32 %v211, 0.5
  %v220 = vmul.f32 %v212, 0.5
  %v221 = vmul.f32 %v213, 0.5
  %v222 = vmul.f32 %v118, %v214
  %v223 = vmul.f32 %v119, %v215
  %v224 = vmul.f32 %v120, %v216
  %v225 = vmul.f32 %v121, %v217
  %v226 = vmul.f32 %v122, %v218
  %v227 = vmul.f32 %v123, %v219
  %v228 = vmul.f32 %v124, %v220
  %v229 = vmul.f32 %v125, %v221
  %vm230 = vcmp.lt.f32.partialorder %v222, 1.0
  %vm231 = vcmp.lt.f32.partialorder %v223, 1.0
  %vm232 = vcmp.lt.f32.partialorder %v224, 1.0
  %vm233 = vcmp.lt.f32.partialorder %v225, 1.0
  %vm234 = vcmp.lt.f32.partialorder %v226, 1.0
  %vm235 = vcmp.lt.f32.partialorder %v227, 1.0
  %vm236 = vcmp.lt.f32.partialorder %v228, 1.0
  %vm237 = vcmp.lt.f32.partialorder %v229, 1.0
  %v238 = vmul.f32 %v222, 0.5
  %v239 = vmul.f32 %v223, 0.5
  %v240 = vmul.f32 %v224, 0.5
  %v241 = vmul.f32 %v225, 0.5
  %v242 = vmul.f32 %v226, 0.5
  %v243 = vmul.f32 %v227, 0.5
  %v244 = vmul.f32 %v228, 0.5
  %v245 = vmul.f32 %v229, 0.5
  %v246 = vmul.f32 %v238, %v222
  %v247 = vmul.f32 %v239, %v223
  %v248 = vmul.f32 %v240, %v224
  %v249 = vmul.f32 %v241, %v225
  %v250 = vmul.f32 %v242, %v226
  %v251 = vmul.f32 %v243, %v227
  %v252 = vmul.f32 %v244, %v228
  %v253 = vmul.f32 %v245, %v229
  %v254 = vsub.f32 %v222, 0.5
  %v255 = vsub.f32 %v223, 0.5
  %v256 = vsub.f32 %v224, 0.5
  %v257 = vsub.f32 %v225, 0.5
  %v258 = vsub.f32 %v226, 0.5
  %v259 = vsub.f32 %v227, 0.5
  %v260 = vsub.f32 %v228, 0.5
  %v261 = vsub.f32 %v229, 0.5
  %v262 = vsel %vm230, %v246, %v254
  %v263 = vsel %vm231, %v247, %v255
  %v264 = vsel %vm232, %v248, %v256
  %v265 = vsel %vm233, %v249, %v257
  %v266 = vsel %vm234, %v250, %v258
  %v267 = vsel %vm235, %v251, %v259
  %v268 = vsel %vm236, %v252, %v260
  %v269 = vsel %vm237, %v253, %v261
  %vm270 = vmxor %vm46, 1
  %vm271 = vmxor %vm47, 1
  %vm272 = vmxor %vm48, 1
  %vm273 = vmxor %vm49, 1
  %vm274 = vmxor %vm50, 1
  %vm275 = vmxor %vm51, 1
  %vm276 = vmxor %vm52, 1
  %vm277 = vmxor %vm53, 1
  %vm278 = vcmp.lt.f32.partialorder %v14, -15.0
  %vm279 = vcmp.lt.f32.partialorder %v15, -15.0
  %vm280 = vcmp.lt.f32.partialorder %v16, -15.0
  %vm281 = vcmp.lt.f32.partialorder %v17, -15.0
  %vm282 = vcmp.lt.f32.partialorder %v18, -15.0
  %vm283 = vcmp.lt.f32.partialorder %v19, -15.0
  %vm284 = vcmp.lt.f32.partialorder %v20, -15.0
  %vm285 = vcmp.lt.f32.partialorder %v21, -15.0
  %vm286 = vmxor %vm38, 1
  %vm287 = vmxor %vm39, 1
  %vm288 = vmxor %vm40, 1
  %vm289 = vmxor %vm41, 1
  %vm290 = vmxor %vm42, 1
  %vm291 = vmxor %vm43, 1
  %vm292 = vmxor %vm44, 1
  %vm293 = vmxor %vm45, 1
  %vm294 = vmand %vm278, %vm286
  %vm295 = vmand %vm279, %vm287
  %vm296 = vmand %vm280, %vm288
  %vm297 = vmand %vm281, %vm289
  %vm298 = vmand %vm282, %vm290
  %vm299 = vmand %vm283, %vm291
  %vm300 = vmand %vm284, %vm292
  %vm301 = vmand %vm285, %vm293
  %vm302 = vmor %vm270, %vm294
  %vm303 = vmor %vm271, %vm295
  %vm304 = vmor %vm272, %vm296
  %vm305 = vmor %vm273, %vm297
  %vm306 = vmor %vm274, %vm298
  %vm307 = vmor %vm275, %vm299
  %vm308 = vmor %vm276, %vm300
  %vm309 = vmor %vm277, %vm301
  %v310 = vsel %vm302, 0.0, %v262
  %v311 = vsel %vm303, 0.0, %v263
  %v312 = vsel %vm304, 0.0, %v264
  %v313 = vsel %vm305, 0.0, %v265
  %v314 = vsel %vm306, 0.0, %v266
  %v315 = vsel %vm307, 0.0, %v267
  %v316 = vsel %vm308, 0.0, %v268
  %v317 = vsel %vm309, 0.0, %v269
  %vm318 = vcmp.gt.f32.partialorder %v310, 5.0
  %vm319 = vcmp.gt.f32.partialorder %v311, 5.0
  %vm320 = vcmp.gt.f32.partialorder %v312, 5.0
  %vm321 = vcmp.gt.f32.partialorder %v313, 5.0
  %vm322 = vcmp.gt.f32.partialorder %v314, 5.0
  %vm323 = vcmp.gt.f32.partialorder %v315, 5.0
  %vm324 = vcmp.gt.f32.partialorder %v316, 5.0
  %vm325 = vcmp.gt.f32.partialorder %v317, 5.0
  %v326 = vsub.f32 %v310, 4.0
  %v327 = vsub.f32 %v311, 4.0
  %v328 = vsub.f32 %v312, 4.0
  %v329 = vsub.f32 %v313, 4.0
  %v330 = vsub.f32 %v314, 4.0
  %v331 = vsub.f32 %v315, 4.0
  %v332 = vsub.f32 %v316, 4.0
  %v333 = vsub.f32 %v317, 4.0
  %v334 = vlog2.pop %v326
  %v335 = vmul.f32 %v334, 0.6931472
  %v336 = vlog2.pop %v327
  %v337 = vmul.f32 %v336, 0.6931472
  %v338 = vlog2.pop %v328
  %v339 = vmul.f32 %v338, 0.6931472
  %v340 = vlog2.pop %v329
  %v341 = vmul.f32 %v340, 0.6931472
  %v342 = vlog2.pop %v330
  %v343 = vmul.f32 %v342, 0.6931472
  %v344 = vlog2.pop %v331
  %v345 = vmul.f32 %v344, 0.6931472
  %v346 = vlog2.pop %v332
  %v347 = vmul.f32 %v346, 0.6931472
  %v348 = vlog2.pop %v333
  %v349 = vmul.f32 %v348, 0.6931472
  %v350 = vadd.f32 %v335, 5.0
  %v351 = vadd.f32 %v337, 5.0
  %v352 = vadd.f32 %v339, 5.0
  %v353 = vadd.f32 %v341, 5.0
  %v354 = vadd.f32 %v343, 5.0
  %v355 = vadd.f32 %v345, 5.0
  %v356 = vadd.f32 %v347, 5.0
  %v357 = vadd.f32 %v349, 5.0
  %v358 = vsel %vm318, %v350, %v310
  %v359 = vsel %vm319, %v351, %v311
  %v360 = vsel %vm320, %v352, %v312
  %v361 = vsel %vm321, %v353, %v313
  %v362 = vsel %vm322, %v354, %v314
  %v363 = vsel %vm323, %v355, %v315
  %v364 = vsel %vm324, %v356, %v316
  %v365 = vsel %vm325, %v357, %v317
  %v366 = vmul.f32 %v30, 0.33333334
  %v367 = vmul.f32 %v31, 0.33333334
  %v368 = vmul.f32 %v32, 0.33333334
  %v369 = vmul.f32 %v33, 0.33333334
  %v370 = vmul.f32 %v34, 0.33333334
  %v371 = vmul.f32 %v35, 0.33333334
  %v372 = vmul.f32 %v36, 0.33333334
  %v373 = vmul.f32 %v37, 0.33333334
  %v374 = vtanh.pop %v366
  %v375 = vtanh.pop %v367
  %v376 = vtanh.pop %v368
  %v377 = vtanh.pop %v369
  %v378 = vtanh.pop %v370
  %v379 = vtanh.pop %v371
  %v380 = vtanh.pop %v372
  %v381 = vtanh.pop %v373
  %v382 = vmul.f32 %v374, 3.0
  %v383 = vmul.f32 %v375, 3.0
  %v384 = vmul.f32 %v376, 3.0
  %v385 = vmul.f32 %v377, 3.0
  %v386 = vmul.f32 %v378, 3.0
  %v387 = vmul.f32 %v379, 3.0
  %v388 = vmul.f32 %v380, 3.0
  %v389 = vmul.f32 %v381, 3.0
  %v390 = vmul.f32 %v358, 0.5
  %v391 = vmul.f32 %v359, 0.5
  %v392 = vmul.f32 %v360, 0.5
  %v393 = vmul.f32 %v361, 0.5
  %v394 = vmul.f32 %v362, 0.5
  %v395 = vmul.f32 %v363, 0.5
  %v396 = vmul.f32 %v364, 0.5
  %v397 = vmul.f32 %v365, 0.5
  %v398 = vsub.f32 0.0, %v382
  %v399 = vsub.f32 0.0, %v383
  %v400 = vsub.f32 0.0, %v384
  %v401 = vsub.f32 0.0, %v385
  %v402 = vsub.f32 0.0, %v386
  %v403 = vsub.f32 0.0, %v387
  %v404 = vsub.f32 0.0, %v388
  %v405 = vsub.f32 0.0, %v389
  %v406 = vmul.f32 %v398, 1.442695
  %v407 = vpow.pop %v406
  %v408 = vmul.f32 %v399, 1.442695
  %v409 = vpow.pop %v408
  %v410 = vmul.f32 %v400, 1.442695
  %v411 = vpow.pop %v410
  %v412 = vmul.f32 %v401, 1.442695
  %v413 = vpow.pop %v412
  %v414 = vmul.f32 %v402, 1.442695
  %v415 = vpow.pop %v414
  %v416 = vmul.f32 %v403, 1.442695
  %v417 = vpow.pop %v416
  %v418 = vmul.f32 %v404, 1.442695
  %v419 = vpow.pop %v418
  %v420 = vmul.f32 %v405, 1.442695
  %v421 = vpow.pop %v420
  %v422 = vmul.f32 %v390, %v407
  %v423 = vmul.f32 %v391, %v409
  %v424 = vmul.f32 %v392, %v411
  %v425 = vmul.f32 %v393, %v413
  %v426 = vmul.f32 %v394, %v415
  %v427 = vmul.f32 %v395, %v417
  %v428 = vmul.f32 %v396, %v419
  %v429 = vmul.f32 %v397, %v421
  %v430 = vmul.f32 %v382, 0.5
  %v431 = vmul.f32 %v383, 0.5
  %v432 = vmul.f32 %v384, 0.5
  %v433 = vmul.f32 %v385, 0.5
  %v434 = vmul.f32 %v386, 0.5
  %v435 = vmul.f32 %v387, 0.5
  %v436 = vmul.f32 %v388, 0.5
  %v437 = vmul.f32 %v389, 0.5
  %v438 = vadd.f32 %v422, %v430
  %v439 = vadd.f32 %v423, %v431
  %v440 = vadd.f32 %v424, %v432
  %v441 = vadd.f32 %v425, %v433
  %v442 = vadd.f32 %v426, %v434
  %v443 = vadd.f32 %v427, %v435
  %v444 = vadd.f32 %v428, %v436
  %v445 = vadd.f32 %v429, %v437
  %v446 = vsel %vm38, %v438, %v358
  %v447 = vsel %vm39, %v439, %v359
  %v448 = vsel %vm40, %v440, %v360
  %v449 = vsel %vm41, %v441, %v361
  %v450 = vsel %vm42, %v442, %v362
  %v451 = vsel %vm43, %v443, %v363
  %v452 = vsel %vm44, %v444, %v364
  %v453 = vsel %vm45, %v445, %v365
  %454 = vst [vmem:[%s3] sm:$0xff] %v446
  %455 = vst [vmem:[%s3 + $0x8] sm:$0xff] %v447
  %456 = vst [vmem:[%s3 + $0x10] sm:$0xff] %v448
  %457 = vst [vmem:[%s3 + $0x18] sm:$0xff] %v449
  %458 = vst [vmem:[%s3 + $0x20] sm:$0xff] %v450
  %459 = vst [vmem:[%s3 + $0x28] sm:$0xff] %v451
  %460 = vst [vmem:[%s3 + $0x30] sm:$0xff] %v452
  %461 = vst [vmem:[%s3 + $0x38] sm:$0xff] %v453
  // Predicated region
  $region14: #{_bce_forward_impl.1} parent=0 // pred_check
    _
  $region15: #{_bce_forward_impl.1} parent=0 // pred_check_branch
    %463 = sbr.rel (0) target = $region17
  $region16: #{_bce_forward_impl.1} parent=0 // pred_region
    _
  $region17: #{_bce_forward_impl.1} parent=0 // pred_fallthru
    _
  // Predicated region
  $region18: #{_bce_forward_impl.1} parent=0 // pred_check
    _
  $region19: #{_bce_forward_impl.1} parent=0 // pred_check_branch
    %465 = sbr.rel (0) target = $region21
  $region20: #{_bce_forward_impl.1} parent=0 // pred_region
    _
  $region21: #{_bce_forward_impl.1} parent=0 // pred_fallthru
    _

</llo_original>
